<compile_context>
chip_gen: v5e
topology: v5e:2x2
jax: 0.10.0
libtpu: 0.0.40
codegen_flags: <defaults>
</compile_context>

<pallas_src>
import functools

import jax
import jax.numpy as jnp
from jax import lax
from jax.experimental import pallas as pl
from jax.experimental.pallas import tpu as pltpu

LANES = 128
SUBLANES = 8
DEFAULT_TILE_ROWS = 8192   # (8192, 128) f32 = 4 MiB / input tile; 16 MiB double-buffered


def _num_tensorcores():
    # Best-effort: split the streaming work across the 2 TensorCores on v7x-class
    # chips; v5e / v6e have one TC per chip so a split only adds overhead.
    try:
        kind = jax.devices()[0].device_kind.lower().replace(" ", "")
    except Exception:
        return 1
    return 2 if ("v7" in kind or "tpu7" in kind) else 1


def _mse_nans_kernel(yt_ref, yp_ref, sum_ref, cnt_ref, *,
                     tile_rows, acc_rows, nblocks, blocks_per_split,
                     rows_in_last_block, has_ragged, has_overshoot):
    s = pl.program_id(0)          # TensorCore split axis ("parallel")
    j = pl.program_id(1)          # streaming axis ("arbitrary")
    block_id = s * blocks_per_split + j

    @pl.when(j == 0)
    def _():
        sum_ref[...] = jnp.zeros_like(sum_ref)
        cnt_ref[...] = jnp.zeros_like(cnt_ref)

    def accumulate(apply_row_mask):
        # Upcast in-kernel: only native-dtype bytes cross HBM, the VPU cast is free
        # while the kernel is DMA-bound.
        yt = yt_ref[...].astype(jnp.float32)
        yp = yp_ref[...].astype(jnp.float32)
        mask = jnp.logical_not(jnp.isnan(yt))
        if apply_row_mask:
            # Only the single possibly-ragged block pays for the iota/compare.
            row_ids = lax.broadcasted_iota(jnp.int32, (tile_rows, LANES), 0)
            mask = jnp.logical_and(mask, row_ids < rows_in_last_block)
        # Select (not multiply-by-mask) so NaN targets and out-of-bounds garbage
        # never leak into the sum.
        diff = jnp.where(mask, yp - yt, 0.0)
        sq = diff * diff
        cnt = mask.astype(jnp.float32)
        # Wide resident accumulator: acc_rows independent VPU add chains; the final
        # tiny cross-lane fold happens in the wrapper.
        sum_ref[0] += jnp.sum(sq.reshape(tile_rows // acc_rows, acc_rows, LANES), axis=0)
        cnt_ref[0] += jnp.sum(cnt.reshape(tile_rows // acc_rows, acc_rows, LANES), axis=0)

    if not (has_ragged or has_overshoot):
        accumulate(False)                       # straight-line fast path
    else:
        last_full = nblocks - 1 if has_ragged else nblocks
        @pl.when(block_id < last_full)
        def _():
            accumulate(False)
        if has_ragged:
            @pl.when(block_id == nblocks - 1)
            def _():
                accumulate(True)
        # block_id >= nblocks (overshoot steps of the last split) contribute nothing.


def mean_squared_error_nans(y_true, y_pred, *, tile_rows=DEFAULT_TILE_ROWS,
                            num_splits=None):
    assert y_true.shape == y_pred.shape
    yt = jnp.ravel(y_true)
    yp = jnp.ravel(y_pred)
    n = yt.size

    # Packed-dtype sublane multiple for the block second-minor dim
    # (8 for f32, 16 for bf16, 32 for int8/fp8).
    sub_mult = SUBLANES
    for d in (y_true.dtype, y_pred.dtype):
        sub_mult = max(sub_mult, 32 // max(1, jnp.dtype(d).itemsize))
    chunk = sub_mult * LANES

    aligned = (n // chunk) * chunk
    if aligned == 0:
        # Degenerate tiny input: nothing worth streaming through a kernel.
        mask = jnp.logical_not(jnp.isnan(yt))
        diff = jnp.where(mask, yp.astype(jnp.float32) - yt.astype(jnp.float32), 0.0)
        return jnp.sum(diff * diff) / jnp.sum(mask.astype(jnp.float32))

    # Ragged tail (< chunk elements): tiny jnp reduction in the wrapper instead of a
    # full-array jnp.pad copy (the kernel is HBM-bandwidth-bound — avoid extra traffic).
    tail_sum = jnp.float32(0.0)
    tail_cnt = jnp.float32(0.0)
    if aligned < n:
        yt_t = yt[aligned:]
        yp_t = yp[aligned:]
        tmask = jnp.logical_not(jnp.isnan(yt_t))
        tdiff = jnp.where(tmask, yp_t.astype(jnp.float32) - yt_t.astype(jnp.float32), 0.0)
        tail_sum = jnp.sum(tdiff * tdiff)
        tail_cnt = jnp.sum(tmask.astype(jnp.float32))

    rows = aligned // LANES                       # multiple of sub_mult
    yt2d = yt[:aligned].reshape(rows, LANES)      # free reshape when aligned == n
    yp2d = yp[:aligned].reshape(rows, LANES)

    # Tile as large as possible (amortize per-step overhead), multiple of sub_mult.
    t_rows = max(sub_mult, (min(tile_rows, rows) // sub_mult) * sub_mult)
    nblocks = pl.cdiv(rows, t_rows)

    nsplit = _num_tensorcores() if num_splits is None else num_splits
    nsplit = max(1, min(nsplit, nblocks))
    bps = pl.cdiv(nblocks, nsplit)                # blocks per split
    has_overshoot = nsplit * bps != nblocks
    has_ragged = rows % t_rows != 0
    rows_in_last_block = rows - (nblocks - 1) * t_rows

    # Widest accumulator block the tile allows (independent VPU add chains).
    acc_rows = SUBLANES
    for cand in (64, 32, 16):
        if t_rows % cand == 0:
            acc_rows = cand
            break

    if has_overshoot:
        def in_map(s_, j_):
            # Clamp overshoot steps to the last real block (their work is skipped).
            return (jnp.minimum(s_ * bps + j_, nblocks - 1), 0)
    else:
        def in_map(s_, j_):
            return (s_ * bps + j_, 0)

    kernel = functools.partial(
        _mse_nans_kernel,
        tile_rows=t_rows, acc_rows=acc_rows, nblocks=nblocks,
        blocks_per_split=bps, rows_in_last_block=rows_in_last_block,
        has_ragged=has_ragged, has_overshoot=has_overshoot)

    # Right-sized VMEM budget: 2 inputs x 2 pipeline buffers x tile + accumulators
    # + slack for compiler-internal scratch (never claim all of v7x's 64 MiB).
    tile_bytes = t_rows * LANES * (jnp.dtype(y_true.dtype).itemsize
                                   + jnp.dtype(y_pred.dtype).itemsize)
    acc_bytes = 2 * 2 * acc_rows * LANES * 4
    vmem_limit = int(min(max(2 * tile_bytes + acc_bytes + (8 << 20), 32 << 20), 48 << 20))

    psum, pcnt = pl.pallas_call(
        kernel,
        out_shape=(
            jax.ShapeDtypeStruct((nsplit, acc_rows, LANES), jnp.float32),
            jax.ShapeDtypeStruct((nsplit, acc_rows, LANES), jnp.float32),
        ),
        grid_spec=pltpu.PrefetchScalarGridSpec(
            num_scalar_prefetch=0,
            grid=(nsplit, bps),
            # pipeline_mode=pl.Buffered(3) is a possible further (low single-digit %)
            # win at split boundaries — keep default double-buffering until measured.
            in_specs=[
                pl.BlockSpec((t_rows, LANES), in_map),
                pl.BlockSpec((t_rows, LANES), in_map),
            ],
            out_specs=(
                pl.BlockSpec((1, acc_rows, LANES), lambda s_, j_: (s_, 0, 0)),
                pl.BlockSpec((1, acc_rows, LANES), lambda s_, j_: (s_, 0, 0)),
            ),
        ),
        compiler_params=pltpu.CompilerParams(
            # On v7x, verify with xprof that "parallel" shards the leading axis across
            # both TensorCores; if not, switch that axis to pltpu.CORE_PARALLEL.
            dimension_semantics=("parallel", "arbitrary"),
            vmem_limit_bytes=vmem_limit,
        ),
    )(yt2d, yp2d)

    total_sum = jnp.sum(psum) + tail_sum
    total_cnt = jnp.sum(pcnt) + tail_cnt
    return total_sum / total_cnt


def _reference(y_true, y_pred):
    nan_mask = jnp.isnan(y_true)
    nb_values = jnp.sum(jnp.where(nan_mask, 0.0, 1.0))
    y_true_f = jnp.where(nan_mask, y_pred, y_true)
    return jnp.sum(jnp.square(y_pred - y_true_f)) / nb_values


if __name__ == "__main__":
    key = jax.random.PRNGKey(0)
    k1, k2, k3 = jax.random.split(key, 3)

    # Main case: aligned element count (2*4*16*16 = 2048), single block.
    shape = (2, 4, 16, 16)
    y_true = jax.random.normal(k1, shape, dtype=jnp.float32)
    y_pred = jax.random.normal(k2, shape, dtype=jnp.float32)
    nan_sites = jax.random.bernoulli(k3, 0.2, shape)
    y_true = jnp.where(nan_sites, jnp.nan, y_true)

    out = jax.block_until_ready(mean_squared_error_nans(y_true, y_pred))
    ref = _reference(y_true, y_pred)
    assert jnp.allclose(out, ref, rtol=1e-5, atol=1e-6), (out, ref)

    # Secondary checks exercising the wrapper tail, the ragged last block and the
    # overshoot/skip path, at small scale (forced small tiles / 2-way split).
    shape2 = (3, 5, 16, 16)   # 3840 elems = 3 aligned chunks + 768-elem tail
    k4, k5, k6 = jax.random.split(jax.random.PRNGKey(1), 3)
    yt2 = jax.random.normal(k4, shape2, dtype=jnp.float32)
    yp2 = jax.random.normal(k5, shape2, dtype=jnp.float32)
    yt2 = jnp.where(jax.random.bernoulli(k6, 0.2, shape2), jnp.nan, yt2)
    ref2 = _reference(yt2, yp2)

    out2a = jax.block_until_ready(
        mean_squared_error_nans(yt2, yp2, tile_rows=16, num_splits=1))  # ragged block
    assert jnp.allclose(out2a, ref2, rtol=1e-5, atol=1e-6), (out2a, ref2)

    out2b = jax.block_until_ready(
        mean_squared_error_nans(yt2, yp2, tile_rows=8, num_splits=2))   # overshoot step
    assert jnp.allclose(out2b, ref2, rtol=1e-5, atol=1e-6), (out2b, ref2)

    print("KERNEL_OK")
</pallas_src>

<mosaic_0001>
module attributes {stable_mosaic.version = 11 : i64} {
  func.func @_mse_nans_kernel(%arg0: i32, %arg1: i32, %arg2: memref<16x128xf32, #tpu.memory_space<vmem>>, %arg3: memref<16x128xf32, #tpu.memory_space<vmem>>, %arg4: memref<1x16x128xf32, #tpu.memory_space<vmem>>, %arg5: memref<1x16x128xf32, #tpu.memory_space<vmem>>) attributes {dimension_semantics = [#tpu.dimension_semantics<parallel>, #tpu.dimension_semantics<arbitrary>], iteration_bounds = array<i64: 1, 1>, scalar_prefetch = 0 : i64, scratch_operands = 0 : i64, tpu.core_type = #tpu.core_type<tc>, window_params = [{transform_indices = @transform_0, window_bounds = array<i64: 16, 128>}, {transform_indices = @transform_1, window_bounds = array<i64: 16, 128>}, {transform_indices = @transform_2, window_bounds = array<i64: 1, 16, 128>}, {transform_indices = @transform_3, window_bounds = array<i64: 1, 16, 128>}]} {
    %c0_i32 = arith.constant 0 : i32
    %0 = arith.cmpi eq, %arg1, %c0_i32 : i32
    %1 = arith.extui %0 : i1 to i32
    %c0_i32_0 = arith.constant 0 : i32
    %2 = arith.cmpi ne, %1, %c0_i32_0 : i32
    scf.if %2 {
      %cst_19 = arith.constant 0.000000e+00 : f32
      %29 = vector.broadcast %cst_19 : f32 to vector<1x16x128xf32>
      %c0_20 = arith.constant 0 : index
      %c0_21 = arith.constant 0 : index
      %c0_22 = arith.constant 0 : index
      %30 = vector.load %arg4[%c0_20, %c0_21, %c0_22] : memref<1x16x128xf32, #tpu.memory_space<vmem>>, vector<1x16x128xf32>
      tpu.vector_store %arg4[%c0_20, %c0_21, %c0_22], %29 {strides = array<i32>} : memref<1x16x128xf32, #tpu.memory_space<vmem>>, vector<1x16x128xf32>,
      %cst_23 = arith.constant 0.000000e+00 : f32
      %31 = vector.broadcast %cst_23 : f32 to vector<1x16x128xf32>
      %c0_24 = arith.constant 0 : index
      %c0_25 = arith.constant 0 : index
      %c0_26 = arith.constant 0 : index
      %32 = vector.load %arg5[%c0_24, %c0_25, %c0_26] : memref<1x16x128xf32, #tpu.memory_space<vmem>>, vector<1x16x128xf32>
      tpu.vector_store %arg5[%c0_24, %c0_25, %c0_26], %31 {strides = array<i32>} : memref<1x16x128xf32, #tpu.memory_space<vmem>>, vector<1x16x128xf32>,
    } else {
    }
    %c0 = arith.constant 0 : index
    %c0_1 = arith.constant 0 : index
    %3 = vector.load %arg2[%c0, %c0_1] : memref<16x128xf32, #tpu.memory_space<vmem>>, vector<16x128xf32>
    %c0_2 = arith.constant 0 : index
    %c0_3 = arith.constant 0 : index
    %4 = vector.load %arg3[%c0_2, %c0_3] : memref<16x128xf32, #tpu.memory_space<vmem>>, vector<16x128xf32>
    %5 = arith.cmpf one, %3, %3 : vector<16x128xf32>
    %cst = arith.constant dense<true> : vector<16x128xi1>
    %6 = arith.xori %5, %cst : vector<16x128xi1>
    %7 = arith.subf %4, %3 : vector<16x128xf32>
    %cst_4 = arith.constant 0.000000e+00 : f32
    %8 = vector.broadcast %cst_4 : f32 to vector<16x128xf32>
    %9 = arith.select %6, %7, %8 : vector<16x128xi1>, vector<16x128xf32>
    %10 = arith.mulf %9, %9 : vector<16x128xf32>
    %11 = arith.extui %6 : vector<16x128xi1> to vector<16x128xi32>
    %12 = arith.sitofp %11 : vector<16x128xi32> to vector<16x128xf32>
    %c0_5 = arith.constant 0 : index
    %c0_6 = arith.constant 0 : index
    %c0_7 = arith.constant 0 : index
    %13 = vector.load %arg4[%c0_5, %c0_6, %c0_7] : memref<1x16x128xf32, #tpu.memory_space<vmem>>, vector<1x16x128xf32>
    %14 = vector.shape_cast %13 : vector<1x16x128xf32> to vector<16x128xf32>
    %15 = vector.shape_cast %10 : vector<16x128xf32> to vector<1x16x128xf32>
    %cst_8 = arith.constant dense<0.000000e+00> : vector<16x128xf32>
    %16 = vector.multi_reduction <add>, %15, %cst_8 [0] : vector<1x16x128xf32> to vector<16x128xf32>
    %17 = arith.addf %14, %16 : vector<16x128xf32>
    %c0_9 = arith.constant 0 : index
    %c0_10 = arith.constant 0 : index
    %c0_11 = arith.constant 0 : index
    %18 = vector.load %arg4[%c0_9, %c0_10, %c0_11] : memref<1x16x128xf32, #tpu.memory_space<vmem>>, vector<1x16x128xf32>
    %19 = vector.shape_cast %18 : vector<1x16x128xf32> to vector<16x128xf32>
    %20 = vector.shape_cast %17 : vector<16x128xf32> to vector<1x16x128xf32>
    tpu.vector_store %arg4[%c0_9, %c0_10, %c0_11], %20 {strides = array<i32>} : memref<1x16x128xf32, #tpu.memory_space<vmem>>, vector<1x16x128xf32>,
    %c0_12 = arith.constant 0 : index
    %c0_13 = arith.constant 0 : index
    %c0_14 = arith.constant 0 : index
    %21 = vector.load %arg5[%c0_12, %c0_13, %c0_14] : memref<1x16x128xf32, #tpu.memory_space<vmem>>, vector<1x16x128xf32>
    %22 = vector.shape_cast %21 : vector<1x16x128xf32> to vector<16x128xf32>
    %23 = vector.shape_cast %12 : vector<16x128xf32> to vector<1x16x128xf32>
    %cst_15 = arith.constant dense<0.000000e+00> : vector<16x128xf32>
    %24 = vector.multi_reduction <add>, %23, %cst_15 [0] : vector<1x16x128xf32> to vector<16x128xf32>
    %25 = arith.addf %22, %24 : vector<16x128xf32>
    %c0_16 = arith.constant 0 : index
    %c0_17 = arith.constant 0 : index
    %c0_18 = arith.constant 0 : index
    %26 = vector.load %arg5[%c0_16, %c0_17, %c0_18] : memref<1x16x128xf32, #tpu.memory_space<vmem>>, vector<1x16x128xf32>
    %27 = vector.shape_cast %26 : vector<1x16x128xf32> to vector<16x128xf32>
    %28 = vector.shape_cast %25 : vector<16x128xf32> to vector<1x16x128xf32>
    tpu.vector_store %arg5[%c0_16, %c0_17, %c0_18], %28 {strides = array<i32>} : memref<1x16x128xf32, #tpu.memory_space<vmem>>, vector<1x16x128xf32>,
    return
  }
  func.func @transform_0(%arg0: i32, %arg1: i32) -> (i32, i32) {
    %c1_i32 = arith.constant 1 : i32
    %0 = arith.muli %arg0, %c1_i32 : i32
    %1 = arith.addi %0, %arg1 : i32
    %c0_i32 = arith.constant 0 : i32
    %c0_i32_0 = arith.constant 0 : i32
    return %1, %c0_i32 : i32, i32
  }
  func.func @transform_1(%arg0: i32, %arg1: i32) -> (i32, i32) {
    %c1_i32 = arith.constant 1 : i32
    %0 = arith.muli %arg0, %c1_i32 : i32
    %1 = arith.addi %0, %arg1 : i32
    %c0_i32 = arith.constant 0 : i32
    %c0_i32_0 = arith.constant 0 : i32
    return %1, %c0_i32 : i32, i32
  }
  func.func @transform_2(%arg0: i32, %arg1: i32) -> (i32, i32, i32) {
    %c0_i32 = arith.constant 0 : i32
    %c0_i32_0 = arith.constant 0 : i32
    %c0_i32_1 = arith.constant 0 : i32
    return %arg0, %c0_i32, %c0_i32_0 : i32, i32, i32
  }
  func.func @transform_3(%arg0: i32, %arg1: i32) -> (i32, i32, i32) {
    %c0_i32 = arith.constant 0 : i32
    %c0_i32_0 = arith.constant 0 : i32
    %c0_i32_1 = arith.constant 0 : i32
    return %arg0, %c0_i32, %c0_i32_0 : i32, i32, i32
  }
}

</mosaic_0001>

<llo_original>
// kernel: tpu_custom_call.1
$region0: #{tpu_custom_call.1}
  #allocation0 [shape = 'u32[]', space=smem, size = 0x4, offset = 0x4, fixed_abs, tag = 'smem constant byte address 0x4 - core index']
  #allocation1 [shape = 'u32[72,128]{1,0:T(1,128)}', space=vmem, size = 0x9000, scoped, tag = 'internal scratch']
  %s0 = inlined_call_operand.hbm [shape: f32[16,128], index: 0, kind: input, shape index: {}]
  %s1 = inlined_call_operand.hbm [shape: f32[16,128], index: 1, kind: input, shape index: {}]
  %s2 = inlined_call_operand.hbm [shape: f32[1,16,128], index: 2, kind: output, shape index: {0}]
  %s3 = inlined_call_operand.hbm [shape: f32[1,16,128], index: 3, kind: output, shape index: {1}]
  %4 = xla_tuple %s2, %s3
  %s5 = sld [smem:[#allocation0]]
  $region38: #{tpu_custom_call.1} parent=0
    _
  %s7 = ssub.s32 1, %s5
  %s8 = scalar_select 0, %s7, %s5
  $region1: #{tpu_custom_call.1} parent=0
    #allocation2 [shape = 'u8[8192]{0}', space=vmem, size = 0x2000, scoped, tag = 'input window, operand 0, single buffered']
    #allocation3 [shape = 's32[1]{0}', space=sflag, size = 0x4, scoped, tag = 'scoped memory for tpu_custom_call.1']
    #allocation4 [shape = 's32[1]{0}', space=sflag, size = 0x4, scoped, tag = 'scoped memory for tpu_custom_call.1']
    #allocation5 [shape = 'u8[8192]{0}', space=vmem, size = 0x2000, scoped, tag = 'input window, operand 1, single buffered']
    #allocation6 [shape = 's32[1]{0}', space=sflag, size = 0x4, scoped, tag = 'scoped memory for tpu_custom_call.1']
    #allocation7 [shape = 'u8[8192]{0}', space=vmem, size = 0x2000, scoped, tag = 'output window, operand 0, single buffered']
    #allocation8 [shape = 'u8[8192]{0}', space=vmem, size = 0x2000, scoped, tag = 'output window, operand 1, single buffered']
    #allocation9 [shape = 's32[1]{0}', space=sflag, size = 0x4, scoped, tag = 'scoped memory for tpu_custom_call.1']
    %9 = vsyncpa [#allocation3], 0
    %10 = vsyncpa [#allocation6], 0
    %11 = vsyncpa [#allocation4], 0
    %12 = vsyncpa [#allocation9], 0
    // Predicated region
    $region2: #{tpu_custom_call.1} parent=1 // pred_check
      _
    $region3: #{tpu_custom_call.1} parent=1 // pred_check_branch
      %14 = sbr.rel (0) target = $region5
    $region4: #{tpu_custom_call.1} parent=1 // pred_region
      %s15 = sadd.s32 0, 0
      %s16 = smul.u32 2, %s15
      %18 = vsyncadd [#allocation3], 0
      %s19 = smul.addr %s16, 8
      %s20 = scalar_lea.hbm %s0, %s19
      %s21 = sshll.u32 %s20, 4
      %s22 = int_to_ptr.hbm [resolvable:$true] %s21
      %s23 = sshll.u32 [#allocation2], 4
      %s24 = int_to_ptr.vmem [resolvable:$true] %s23
      %29 = dma.hbm_to_vmem [thread:$0]  %s22, 256, %s24, [#allocation3], 128, 128, 8
    $region5: #{tpu_custom_call.1} parent=1 // pred_fallthru
      _
    // Predicated region
    $region6: #{tpu_custom_call.1} parent=1 // pred_check
      _
    $region7: #{tpu_custom_call.1} parent=1 // pred_check_branch
      %31 = sbr.rel (0) target = $region9
    $region8: #{tpu_custom_call.1} parent=1 // pred_region
      %s32 = sadd.s32 0, 0
      %s33 = smul.u32 2, %s32
      %35 = vsyncadd [#allocation6], 0
      %s36 = smul.addr %s33, 8
      %s37 = scalar_lea.hbm %s1, %s36
      %s38 = sshll.u32 %s37, 4
      %s39 = int_to_ptr.hbm [resolvable:$true] %s38
      %s40 = sshll.u32 [#allocation5], 4
      %s41 = int_to_ptr.vmem [resolvable:$true] %s40
      %46 = dma.hbm_to_vmem [thread:$0]  %s39, 256, %s41, [#allocation6], 128, 128, 8
    $region9: #{tpu_custom_call.1} parent=1 // pred_fallthru
      _
    // Predicated region
    $region10: #{tpu_custom_call.1} parent=1 // pred_check
      _
    $region11: #{tpu_custom_call.1} parent=1 // pred_check_branch
      %48 = sbr.rel (0) target = $region13
    $region12: #{tpu_custom_call.1} parent=1 // pred_region
      %50 = dma.done [#allocation3], 256
    $region13: #{tpu_custom_call.1} parent=1 // pred_fallthru
      _
    // Predicated region
    $region14: #{tpu_custom_call.1} parent=1 // pred_check
      _
    $region15: #{tpu_custom_call.1} parent=1 // pred_check_branch
      %52 = sbr.rel (0) target = $region17
    $region16: #{tpu_custom_call.1} parent=1 // pred_region
      %54 = dma.done [#allocation6], 256
    $region17: #{tpu_custom_call.1} parent=1 // pred_fallthru
      _
    %s55 = sadd.s32 0, 0
    %s56 = smul.u32 2, %s55
    %s57 = sadd.s32 0, 0
    %s58 = smul.u32 2, %s57
    %p59 = scmp.eq.s32.totalorder 0, 0
    // Predicated region
    $region18: #{tpu_custom_call.1} parent=1 // pred_check
      %p60 = pneg %p59
    $region19: #{tpu_custom_call.1} parent=1 // pred_check_branch
      %62 = sbr.rel (%p60) target = $region21
    $region20: #{tpu_custom_call.1} parent=1 // pred_region
      %63 = vst [vmem:[#allocation7] sm:$0xff] 0.0
      %64 = vst [vmem:[#allocation7 + $0x8] sm:$0xff] 0.0
      %65 = vst [vmem:[#allocation8] sm:$0xff] 0.0
      %66 = vst [vmem:[#allocation8 + $0x8] sm:$0xff] 0.0
    $region21: #{tpu_custom_call.1} parent=1 // pred_fallthru
      _
    %v67 = vld [vmem:[#allocation2] sm:$0xff]
    %v68 = vld [vmem:[#allocation2 + $0x8] sm:$0xff]
    %v69 = vld [vmem:[#allocation5] sm:$0xff]
    %v70 = vld [vmem:[#allocation5 + $0x8] sm:$0xff]
    %vm71 = vcmp.ne.f32.partialorder %v67, %v67
    %vm72 = vcmp.ne.f32.partialorder %v68, %v68
    %vm73 = vmxor %vm71, 1
    %vm74 = vmxor %vm72, 1
    %v75 = vsub.f32 %v69, %v67
    %v76 = vsub.f32 %v70, %v68
    %v77 = vsel %vm73, %v75, 0.0
    %v78 = vsel %vm74, %v76, 0.0
    %v79 = vmul.f32 %v77, %v77
    %v80 = vmul.f32 %v78, %v78
    %v81 = vsel %vm73, 1, 0
    %v82 = vsel %vm74, 1, 0
    %v83 = vcvt.s32.f32 %v81
    %v84 = vcvt.s32.f32 %v82
    %v85 = vld [vmem:[#allocation7] sm:$0xff]
    %v86 = vld [vmem:[#allocation7 + $0x8] sm:$0xff]
    %v87 = vadd.f32 %v79, 0.0
    %v88 = vadd.f32 %v80, 0.0
    %v89 = vadd.f32 %v85, %v87
    %v90 = vadd.f32 %v86, %v88
    %91 = vst [vmem:[#allocation7] sm:$0xff] %v89
    %92 = vst [vmem:[#allocation7 + $0x8] sm:$0xff] %v90
    %v93 = vld [vmem:[#allocation8] sm:$0xff]
    %v94 = vld [vmem:[#allocation8 + $0x8] sm:$0xff]
    %v95 = vadd.f32 %v83, 0.0
    %v96 = vadd.f32 %v84, 0.0
    %v97 = vadd.f32 %v93, %v95
    %v98 = vadd.f32 %v94, %v96
    %99 = vst [vmem:[#allocation8] sm:$0xff] %v97
    %100 = vst [vmem:[#allocation8 + $0x8] sm:$0xff] %v98
    // Predicated region
    $region22: #{tpu_custom_call.1} parent=1 // pred_check
      _
    $region23: #{tpu_custom_call.1} parent=1 // pred_check_branch
      %102 = sbr.rel (0) target = $region25
    $region24: #{tpu_custom_call.1} parent=1 // pred_region
      %104 = vsyncadd [#allocation4], 0
      %s105 = sshll.u32 [#allocation7], 4
      %s106 = int_to_ptr.vmem [resolvable:$true] %s105
      %s107 = sshll.u32 %s2, 4
      %s108 = int_to_ptr.hbm [resolvable:$true] %s107
      %113 = dma.vmem_to_hbm [thread:$0]  %s106, 256, %s108, [#allocation4], 128, 128, 8
    $region25: #{tpu_custom_call.1} parent=1 // pred_fallthru
      _
    // Predicated region
    $region26: #{tpu_custom_call.1} parent=1 // pred_check
      _
    $region27: #{tpu_custom_call.1} parent=1 // pred_check_branch
      %115 = sbr.rel (0) target = $region29
    $region28: #{tpu_custom_call.1} parent=1 // pred_region
      %117 = vsyncadd [#allocation9], 0
      %s118 = sshll.u32 [#allocation8], 4
      %s119 = int_to_ptr.vmem [resolvable:$true] %s118
      %s120 = sshll.u32 %s3, 4
      %s121 = int_to_ptr.hbm [resolvable:$true] %s120
      %126 = dma.vmem_to_hbm [thread:$0]  %s119, 256, %s121, [#allocation9], 128, 128, 8
    $region29: #{tpu_custom_call.1} parent=1 // pred_fallthru
      _
    // Predicated region
    $region30: #{tpu_custom_call.1} parent=1 // pred_check
      _
    $region31: #{tpu_custom_call.1} parent=1 // pred_check_branch
      %128 = sbr.rel (0) target = $region33
    $region32: #{tpu_custom_call.1} parent=1 // pred_region
      %130 = dma.done [#allocation4], 256
    $region33: #{tpu_custom_call.1} parent=1 // pred_fallthru
      _
    // Predicated region
    $region34: #{tpu_custom_call.1} parent=1 // pred_check
      _
    $region35: #{tpu_custom_call.1} parent=1 // pred_check_branch
      %132 = sbr.rel (0) target = $region37
    $region36: #{tpu_custom_call.1} parent=1 // pred_region
      %134 = dma.done [#allocation9], 256
    $region37: #{tpu_custom_call.1} parent=1 // pred_fallthru
      _
    %135 = vsyncpa [#allocation3], 1
    %136 = vsyncpa [#allocation6], 1
    %137 = vsyncpa [#allocation4], 1
    %138 = vsyncpa [#allocation9], 1

</llo_original>
